<compile_context>
chip_gen: v7x
topology: tpu7x:2x2x1
jax: 0.10.0
libtpu: 0.0.40
codegen_flags: <defaults>
</compile_context>

<pallas_src>
import functools

import jax
import jax.numpy as jnp
from jax.experimental import pallas as pl
from jax.experimental.pallas import tpu as pltpu


# ----------------------------- hardware-aware knobs -----------------------------

def _tpu_vmem_capacity_bytes():
    """Physical VMEM per TensorCore (128 MiB on v5e/v6e, 64 MiB on v7x)."""
    try:
        info = pltpu.get_tpu_info()
        cap = getattr(info, "vmem_capacity_bytes", None)
        if cap:
            return int(cap)
    except Exception:
        pass
    return 128 * 1024 * 1024


# ----------------------------- fused K|V projection -----------------------------

def _kv_proj_kernel(ctx_ref, wkv_ref, bkv_ref, kt_ref, v_ref, *, hidden_size):
    c = ctx_ref[...]                                            # (tl, D)  compute dtype
    w = wkv_ref[...]                                            # (D, 2D)  compute dtype
    kv = jnp.dot(c, w, preferred_element_type=jnp.float32)      # (tl, 2D) f32 acc
    kv = kv + bkv_ref[...]                                      # (1, 2D)  f32 bias
    # K written transposed (D, tl): one producer-side transpose so the attention
    # kernel never relays out K per (q-tile, head).
    kt_ref[...] = kv[:, :hidden_size].T.astype(kt_ref.dtype)
    v_ref[...] = kv[:, hidden_size:].astype(v_ref.dtype)


def _project_kv(context_c, wkv, bkv, *, tile_l, compute_dtype, vmem_limit):
    B, L, D = context_c.shape
    kernel = functools.partial(_kv_proj_kernel, hidden_size=D)
    return pl.pallas_call(
        kernel,
        out_shape=(jax.ShapeDtypeStruct((B, D, L), compute_dtype),    # K^T
                   jax.ShapeDtypeStruct((B, L, D), compute_dtype)),   # V
        grid_spec=pltpu.PrefetchScalarGridSpec(
            num_scalar_prefetch=0,
            grid=(B, L // tile_l),
            in_specs=[
                pl.BlockSpec((pl.Squeezed(), tile_l, D), lambda b, l: (b, l, 0)),
                pl.BlockSpec((D, 2 * D), lambda b, l: (0, 0)),
                pl.BlockSpec((1, 2 * D), lambda b, l: (0, 0)),
            ],
            out_specs=(
                pl.BlockSpec((pl.Squeezed(), D, tile_l), lambda b, l: (b, 0, l)),
                pl.BlockSpec((pl.Squeezed(), tile_l, D), lambda b, l: (b, l, 0)),
            ),
        ),
        compiler_params=pltpu.CompilerParams(
            dimension_semantics=("parallel", "parallel"),
            vmem_limit_bytes=vmem_limit,
        ),
    )(context_c, wkv, bkv)


# --------------------------------- attention ------------------------------------

def _attn_kernel(h_ref, wq_ref, bq_ref, kt_ref, v_ref, *rest,
                 num_heads, head_size, compute_dtype, mask_kind,
                 output_attentions, refine_recip):
    idx = 0
    mask_ref = None
    if mask_kind is not None:
        mask_ref = rest[idx]
        idx += 1
    out_ref = rest[idx]
    idx += 1
    probs_ref = rest[idx] if output_attentions else None

    cdt = compute_dtype
    tq = h_ref.shape[0]
    L = v_ref.shape[0]

    # Q projection; softmax scale is already folded into wq/bq by the wrapper.
    # Inputs are pre-cast to compute_dtype; accumulate in f32 on the MXU.
    q = jnp.dot(h_ref[...], wq_ref[...], preferred_element_type=jnp.float32)
    q = q + bq_ref[...]                                          # (tq, D) f32
    qc = q.astype(cdt)

    kt = kt_ref[...]                                             # (D, L)  compute dtype
    v = v_ref[...]                                               # (L, D)  compute dtype

    # Mask: cast + broadcast hoisted out of the head loop (JAX does not CSE
    # broadcast_in_dim).
    mask2d = None
    mask3d = None
    if mask_kind == "compact":                                   # (1, L) -> (tq, L)
        mask2d = jnp.broadcast_to(mask_ref[...].astype(jnp.float32), (tq, L))
    elif mask_kind == "bnl":                                     # (tq, L)
        mask2d = mask_ref[...].astype(jnp.float32)
    elif mask_kind == "bhnl":                                    # (H, tq, L)
        mask3d = mask_ref[...].astype(jnp.float32)

    for h in range(num_heads):
        lo = h * head_size
        hi = lo + head_size
        qh = qc[:, lo:hi]                                        # (tq, hd) lane slice
        kth = kt[lo:hi, :]                                       # (hd, L)  sublane slice
        vh = v[:, lo:hi]                                         # (L, hd)

        # scores = qh @ K^T  (canonical (M,K)x(K,N) MXU matmul, f32 acc)
        s = jnp.dot(qh, kth, preferred_element_type=jnp.float32)  # (tq, L)
        if mask2d is not None:
            s = s + mask2d
        elif mask3d is not None:
            s = s + mask3d[h]

        # numerically stable softmax over L (exp / reciprocal on the EUP slot)
        m = jnp.max(s, axis=-1, keepdims=True)
        e = jnp.exp(s - m)
        denom = jnp.sum(e, axis=-1, keepdims=True)
        r = pl.reciprocal(denom, approx=True)
        if refine_recip:
            r = r * (2.0 - denom * r)                            # one Newton step
        p = e * r                                                # (tq, L) f32

        ctx_h = jnp.dot(p.astype(cdt), vh,
                        preferred_element_type=jnp.float32)      # (tq, hd)
        out_ref[:, lo:hi] = ctx_h.astype(out_ref.dtype)          # streamed per head
        if output_attentions:
            probs_ref[h, :, :] = p.astype(probs_ref.dtype)       # lane-dense (tq, L)


def co_modal_self_attention(hidden, context, params, attention_mask=None, *,
                            num_heads, output_attentions=True,
                            compute_dtype=jnp.bfloat16,
                            probs_dtype=jnp.float32):
    """Pallas implementation of CoModalSelfAttention.forward (eval mode).

    Returns (context_layer, attention_probs or None)."""
    B, N, D = hidden.shape
    Bc, L, Dc = context.shape
    assert B == Bc and D == Dc
    assert D % num_heads == 0
    head_size = D // num_heads
    scale = head_size ** (-0.5)
    out_dtype = hidden.dtype

    # --- generation-aware VMEM budget / tile selection -------------------------
    vmem_cap = _tpu_vmem_capacity_bytes()
    vmem_limit = min(int(vmem_cap * 0.85), vmem_cap - 4 * 1024 * 1024)
    big_vmem = vmem_cap > 96 * 1024 * 1024           # True on v5e/v6e, False on v7x

    # q-tile: 256 on 128-MiB chips, 128 otherwise, full extent for small N.
    if big_vmem and N % 256 == 0:
        tq = 256
    elif N % 128 == 0:
        tq = 128
    else:
        tq = N
    # v7x + f32 probs: the double-buffered (H, tq, L) probs block dominates VMEM.
    if (not big_vmem) and output_attentions and tq > 64 and N % 64 == 0:
        probs_block_bytes = num_heads * tq * L * jnp.dtype(probs_dtype).itemsize * 2
        if probs_block_bytes > 20 * 1024 * 1024:
            tq = 64
    # v7x has 2 TensorCores: expose >=2 parallel grid steps when B == 1.
    if (not big_vmem) and B == 1 and N == tq and N % 16 == 0:
        tq = N // 2

    # L-tile for the KV projection (bigger tiles amortize per-step overhead).
    if big_vmem and L % 512 == 0:
        tl = 512
    elif L % 256 == 0:
        tl = 256
    elif L % 128 == 0:
        tl = 128
    else:
        tl = L

    # --- parameters: fold softmax scale into Q, pre-cast to compute_dtype ------
    hidden_c = hidden.astype(compute_dtype)
    context_c = context.astype(compute_dtype)
    wq = (params['wq'] * scale).astype(compute_dtype)
    bq = (params['bq'] * scale).astype(jnp.float32).reshape(1, D)
    wkv = jnp.concatenate([params['wk'], params['wv']],
                          axis=1).astype(compute_dtype)
    bkv = jnp.concatenate([params['bk'], params['bv']]
                          ).astype(jnp.float32).reshape(1, 2 * D)

    kt, v = _project_kv(context_c, wkv, bkv, tile_l=tl,
                        compute_dtype=compute_dtype, vmem_limit=vmem_limit)

    # --- mask normalization (anything broadcastable to (B, H, N, L)) -----------
    mask_kind = None
    mask_arr = None
    if attention_mask is not None:
        m = jnp.asarray(attention_mask, dtype=jnp.float32)
        while m.ndim < 4:
            m = m[None]
        jnp.broadcast_shapes(m.shape, (B, num_heads, N, L))   # validity check
        if m.shape[1] == 1 and m.shape[2] == 1:
            mask_arr = jnp.broadcast_to(m, (B, 1, 1, L))      # compact padding mask
            mask_kind = "compact"
        elif m.shape[1] == 1:
            mask_arr = jnp.broadcast_to(m, (B, 1, N, L))
            mask_kind = "bnl"
        else:
            mask_arr = jnp.broadcast_to(m, (B, num_heads, N, L))
            mask_kind = "bhnl"

    refine_recip = (jnp.dtype(compute_dtype) == jnp.dtype(jnp.float32)
                    or output_attentions)
    kernel = functools.partial(
        _attn_kernel, num_heads=num_heads, head_size=head_size,
        compute_dtype=compute_dtype, mask_kind=mask_kind,
        output_attentions=output_attentions, refine_recip=refine_recip)

    grid = (B, N // tq)

    def _call_attention(use_buffered):
        def qi_invariant(block_shape, index_map):
            # Blocks whose index is constant along the inner qi axis: no need for
            # a double buffer (halves their VMEM footprint on v7x).
            if use_buffered:
                return pl.BlockSpec(block_shape, index_map,
                                    pipeline_mode=pl.Buffered(1))
            return pl.BlockSpec(block_shape, index_map)

        in_specs = [
            pl.BlockSpec((pl.Squeezed(), tq, D), lambda b, qi: (b, qi, 0)),  # hidden
            qi_invariant((D, D), lambda b, qi: (0, 0)),                      # wq (scaled)
            qi_invariant((1, D), lambda b, qi: (0, 0)),                      # bq (scaled)
            qi_invariant((pl.Squeezed(), D, L), lambda b, qi: (b, 0, 0)),    # K^T
            qi_invariant((pl.Squeezed(), L, D), lambda b, qi: (b, 0, 0)),    # V
        ]
        inputs = [hidden_c, wq, bq, kt, v]
        if mask_kind == "compact":
            in_specs.append(qi_invariant((pl.Squeezed(), pl.Squeezed(), 1, L),
                                         lambda b, qi: (b, 0, 0, 0)))
            inputs.append(mask_arr)
        elif mask_kind == "bnl":
            in_specs.append(pl.BlockSpec((pl.Squeezed(), pl.Squeezed(), tq, L),
                                         lambda b, qi: (b, 0, qi, 0)))
            inputs.append(mask_arr)
        elif mask_kind == "bhnl":
            in_specs.append(pl.BlockSpec((pl.Squeezed(), num_heads, tq, L),
                                         lambda b, qi: (b, 0, qi, 0)))
            inputs.append(mask_arr)

        out_specs = [pl.BlockSpec((pl.Squeezed(), tq, D),
                                  lambda b, qi: (b, qi, 0))]
        out_shapes = [jax.ShapeDtypeStruct((B, N, D), out_dtype)]
        if output_attentions:
            out_specs.append(pl.BlockSpec((pl.Squeezed(), num_heads, tq, L),
                                          lambda b, qi: (b, 0, qi, 0)))
            out_shapes.append(
                jax.ShapeDtypeStruct((B, num_heads, N, L), probs_dtype))

        return pl.pallas_call(
            kernel,
            out_shape=tuple(out_shapes),
            grid_spec=pltpu.PrefetchScalarGridSpec(
                num_scalar_prefetch=0,
                grid=grid,                     # qi inner => K/V DMA'd once per batch
                in_specs=in_specs,
                out_specs=tuple(out_specs),
            ),
            compiler_params=pltpu.CompilerParams(
                dimension_semantics=("parallel", "parallel"),
                vmem_limit_bytes=vmem_limit,
            ),
        )(*inputs)

    try:
        results = _call_attention(True)
    except Exception:
        # pipeline_mode=pl.Buffered(1) not supported on this jax/Mosaic build;
        # fall back to default double buffering (correctness unaffected).
        results = _call_attention(False)

    if output_attentions:
        return results[0], results[1]
    return results[0], None


# --------------------------------- reference ------------------------------------

def _reference(hidden, context, params, attention_mask, num_heads):
    """Pure-JAX reference mirroring the PyTorch forward (eval mode)."""
    B, N, D = hidden.shape
    _, L, _ = context.shape
    hd = D // num_heads
    scale = hd ** (-0.5)
    q = hidden @ params['wq'] + params['bq']
    k = context @ params['wk'] + params['bk']
    v = context @ params['wv'] + params['bv']
    q = q.reshape(B, N, num_heads, hd).transpose(0, 2, 1, 3)
    k = k.reshape(B, L, num_heads, hd).transpose(0, 2, 1, 3)
    v = v.reshape(B, L, num_heads, hd).transpose(0, 2, 1, 3)
    scores = jnp.einsum('bhnd,bhld->bhnl', q, k) * scale
    if attention_mask is not None:
        scores = scores + attention_mask
    probs = jax.nn.softmax(scores, axis=-1)
    ctx = jnp.einsum('bhnl,bhld->bhnd', probs, v).transpose(0, 2, 1, 3)
    return ctx.reshape(B, N, D), probs


if __name__ == "__main__":
    # Small synthetic config: hidden_size=32, num_heads=4, head_size=8
    B, N, L, D, H = 2, 8, 8, 32, 4

    key = jax.random.PRNGKey(0)
    ks = jax.random.split(key, 9)
    hidden = jax.random.normal(ks[0], (B, N, D), dtype=jnp.float32)
    context = jax.random.normal(ks[1], (B, L, D), dtype=jnp.float32)
    attention_mask = 0.1 * jax.random.normal(ks[2], (B, 1, N, L), dtype=jnp.float32)

    s = 1.0 / (D ** 0.5)
    params = {
        'wq': s * jax.random.normal(ks[3], (D, D), dtype=jnp.float32),
        'bq': 0.01 * jax.random.normal(ks[4], (D,), dtype=jnp.float32),
        'wk': s * jax.random.normal(ks[5], (D, D), dtype=jnp.float32),
        'bk': 0.01 * jax.random.normal(ks[6], (D,), dtype=jnp.float32),
        'wv': s * jax.random.normal(ks[7], (D, D), dtype=jnp.float32),
        'bv': 0.01 * jax.random.normal(ks[8], (D,), dtype=jnp.float32),
    }

    ref_ctx, ref_probs = _reference(hidden, context, params, attention_mask, H)

    # f32 compute path: near-exact parity with the f32 reference.
    ctx32, probs32 = co_modal_self_attention(
        hidden, context, params, attention_mask, num_heads=H,
        output_attentions=True, compute_dtype=jnp.float32)
    jax.block_until_ready((ctx32, probs32))
    assert ctx32.shape == (B, N, D)
    assert probs32.shape == (B, H, N, L)
    assert probs32.dtype == jnp.float32          # matches the module's softmax dtype
    assert jnp.allclose(ctx32, ref_ctx, atol=1e-3, rtol=1e-3)
    assert jnp.allclose(probs32, ref_probs, atol=1e-3, rtol=1e-3)

    # bf16 compute path (fast path on v6e/v7x): looser tolerance.
    ctx16, probs16 = co_modal_self_attention(
        hidden, context, params, attention_mask, num_heads=H,
        output_attentions=True, compute_dtype=jnp.bfloat16)
    jax.block_until_ready((ctx16, probs16))
    assert jnp.allclose(ctx16, ref_ctx, atol=3e-2, rtol=3e-2)
    assert jnp.allclose(probs16, ref_probs, atol=3e-2, rtol=3e-2)

    # output_attentions=False path (module returns None for probs).
    ctx_only, none_probs = co_modal_self_attention(
        hidden, context, params, attention_mask, num_heads=H,
        output_attentions=False, compute_dtype=jnp.bfloat16)
    jax.block_until_ready(ctx_only)
    assert none_probs is None
    assert jnp.allclose(ctx_only, ref_ctx, atol=3e-2, rtol=3e-2)

    # compact (B,1,1,L) padding-mask path.
    pad_mask = jnp.where(jnp.arange(L)[None, None, None, :] < L - 2, 0.0, -1e9)
    pad_mask = jnp.broadcast_to(pad_mask, (B, 1, 1, L)).astype(jnp.float32)
    ref_ctx_p, _ = _reference(hidden, context, params, pad_mask, H)
    ctx_p, _ = co_modal_self_attention(
        hidden, context, params, pad_mask, num_heads=H,
        output_attentions=False, compute_dtype=jnp.float32)
    jax.block_until_ready(ctx_p)
    assert jnp.allclose(ctx_p, ref_ctx_p, atol=1e-3, rtol=1e-3)

    print("KERNEL_OK")
</pallas_src>

<mosaic_0001>
module attributes {stable_mosaic.version = 11 : i64} {
  func.func @_kv_proj_kernel(%arg0: i32, %arg1: i32, %arg2: memref<1x8x32xf32, #tpu.memory_space<vmem>>, %arg3: memref<32x64xf32, #tpu.memory_space<vmem>>, %arg4: memref<1x64xf32, #tpu.memory_space<vmem>>, %arg5: memref<1x32x8xf32, #tpu.memory_space<vmem>>, %arg6: memref<1x8x32xf32, #tpu.memory_space<vmem>>) attributes {dimension_semantics = [#tpu.dimension_semantics<parallel>, #tpu.dimension_semantics<parallel>], iteration_bounds = array<i64: 2, 1>, scalar_prefetch = 0 : i64, scratch_operands = 0 : i64, tpu.core_type = #tpu.core_type<tc>, window_params = [{transform_indices = @transform_0, window_bounds = array<i64: 1, 8, 32>}, {pipeline_mode = #tpu.pipeline_mode<synchronous>, transform_indices = @transform_1, window_bounds = array<i64: 32, 64>}, {pipeline_mode = #tpu.pipeline_mode<synchronous>, transform_indices = @transform_2, window_bounds = array<i64: 1, 64>}, {transform_indices = @transform_3, window_bounds = array<i64: 1, 32, 8>}, {transform_indices = @transform_4, window_bounds = array<i64: 1, 8, 32>}]} {
    %c0 = arith.constant 0 : index
    %c0_0 = arith.constant 0 : index
    %c0_1 = arith.constant 0 : index
    %0 = vector.load %arg2[%c0, %c0_0, %c0_1] : memref<1x8x32xf32, #tpu.memory_space<vmem>>, vector<1x8x32xf32>
    %1 = vector.shape_cast %0 : vector<1x8x32xf32> to vector<8x32xf32>
    %c0_2 = arith.constant 0 : index
    %c0_3 = arith.constant 0 : index
    %2 = vector.load %arg3[%c0_2, %c0_3] : memref<32x64xf32, #tpu.memory_space<vmem>>, vector<32x64xf32>
    %cst = arith.constant dense<0.000000e+00> : vector<8x64xf32>
    %3 = tpu.matmul %1, %2, %cst {dimension_numbers = #tpu.dot_dimension_numbers<[1], [0], [0], [1], [0, 0, 1, 1], [], []>} : vector<8x32xf32>, vector<32x64xf32>, vector<8x64xf32> -> vector<8x64xf32>
    %c0_4 = arith.constant 0 : index
    %c0_5 = arith.constant 0 : index
    %4 = vector.load %arg4[%c0_4, %c0_5] : memref<1x64xf32, #tpu.memory_space<vmem>>, vector<1x64xf32>
    %5 = vector.broadcast %4 : vector<1x64xf32> to vector<8x64xf32>
    %6 = arith.addf %3, %5 : vector<8x64xf32>
    %7 = vector.extract_strided_slice %6 {offsets = [0, 0], sizes = [8, 32], strides = [1, 1]} : vector<8x64xf32> to vector<8x32xf32>
    %8 = tpu.transpose %7, [1, 0] : vector<8x32xf32> -> vector<32x8xf32>
    %c0_6 = arith.constant 0 : index
    %c0_7 = arith.constant 0 : index
    %c0_8 = arith.constant 0 : index
    %9 = vector.load %arg5[%c0_6, %c0_7, %c0_8] : memref<1x32x8xf32, #tpu.memory_space<vmem>>, vector<1x32x8xf32>
    %10 = vector.shape_cast %9 : vector<1x32x8xf32> to vector<32x8xf32>
    %11 = vector.shape_cast %8 : vector<32x8xf32> to vector<1x32x8xf32>
    tpu.vector_store %arg5[%c0_6, %c0_7, %c0_8], %11 {strides = array<i32>} : memref<1x32x8xf32, #tpu.memory_space<vmem>>, vector<1x32x8xf32>,
    %12 = vector.extract_strided_slice %6 {offsets = [0, 32], sizes = [8, 32], strides = [1, 1]} : vector<8x64xf32> to vector<8x32xf32>
    %c0_9 = arith.constant 0 : index
    %c0_10 = arith.constant 0 : index
    %c0_11 = arith.constant 0 : index
    %13 = vector.load %arg6[%c0_9, %c0_10, %c0_11] : memref<1x8x32xf32, #tpu.memory_space<vmem>>, vector<1x8x32xf32>
    %14 = vector.shape_cast %13 : vector<1x8x32xf32> to vector<8x32xf32>
    %15 = vector.shape_cast %12 : vector<8x32xf32> to vector<1x8x32xf32>
    tpu.vector_store %arg6[%c0_9, %c0_10, %c0_11], %15 {strides = array<i32>} : memref<1x8x32xf32, #tpu.memory_space<vmem>>, vector<1x8x32xf32>,
    return
  }
  func.func @transform_0(%arg0: i32, %arg1: i32) -> (i32, i32, i32) {
    %c0_i32 = arith.constant 0 : i32
    %c0_i32_0 = arith.constant 0 : i32
    return %arg0, %arg1, %c0_i32 : i32, i32, i32
  }
  func.func @transform_1(%arg0: i32, %arg1: i32) -> (i32, i32) {
    %c0_i32 = arith.constant 0 : i32
    %c0_i32_0 = arith.constant 0 : i32
    %c0_i32_1 = arith.constant 0 : i32
    return %c0_i32, %c0_i32_0 : i32, i32
  }
  func.func @transform_2(%arg0: i32, %arg1: i32) -> (i32, i32) {
    %c0_i32 = arith.constant 0 : i32
    %c0_i32_0 = arith.constant 0 : i32
    %c0_i32_1 = arith.constant 0 : i32
    return %c0_i32, %c0_i32_0 : i32, i32
  }
  func.func @transform_3(%arg0: i32, %arg1: i32) -> (i32, i32, i32) {
    %c0_i32 = arith.constant 0 : i32
    %c0_i32_0 = arith.constant 0 : i32
    return %arg0, %c0_i32, %arg1 : i32, i32, i32
  }
  func.func @transform_4(%arg0: i32, %arg1: i32) -> (i32, i32, i32) {
    %c0_i32 = arith.constant 0 : i32
    %c0_i32_0 = arith.constant 0 : i32
    return %arg0, %arg1, %c0_i32 : i32, i32, i32
  }
}

</mosaic_0001>

<llo_original>
// kernel: tpu_custom_call.1
$region0: #{tpu_custom_call.1}
  #allocation0 [shape = 'u32[]', space=smem, size = 0x4, offset = 0x4, fixed_abs, tag = 'smem constant byte address 0x4 - core index']
  #allocation1 [shape = 'u32[144,128]{1,0:T(1,128)}', space=vmem, size = 0x12000, scoped, tag = 'internal scratch']
  %s0 = inlined_call_operand.hbm [shape: f32[2,8,32], index: 0, kind: input, shape index: {}]
  %s1 = inlined_call_operand.hbm [shape: f32[32,64], index: 1, kind: input, shape index: {}]
  %s2 = inlined_call_operand.hbm [shape: f32[1,64], index: 2, kind: input, shape index: {}]
  %s3 = inlined_call_operand.hbm [shape: f32[2,32,8], index: 3, kind: output, shape index: {0}]
  %s4 = inlined_call_operand.hbm [shape: f32[2,8,32], index: 4, kind: output, shape index: {1}]
  %5 = xla_tuple %s3, %s4
  %s6 = sld [smem:[#allocation0]]
  $region65: #{tpu_custom_call.1} parent=0
    _
  %s8 = ssub.s32 1, %s6
  %s9 = scalar_select 0, %s8, %s6
  $region1: #{tpu_custom_call.1} parent=0
    #allocation2 [shape = 'u8[8192]{0}', space=vmem, size = 0x2000, scoped, tag = 'input window, operand 0']
    #allocation3 [shape = 's32[2]{0}', space=sflag, size = 0x8, scoped, tag = 'scoped memory for tpu_custom_call.1']
    #allocation4 [shape = 's32[2]{0}', space=sflag, size = 0x8, scoped, tag = 'scoped memory for tpu_custom_call.1']
    #allocation5 [shape = 'u8[16384]{0}', space=vmem, size = 0x4000, scoped, tag = 'input window, operand 1, single buffered']
    #allocation6 [shape = 's32[1]{0}', space=sflag, size = 0x4, scoped, tag = 'scoped memory for tpu_custom_call.1']
    #allocation7 [shape = 'u8[512]{0}', space=vmem, size = 0x400, scoped, tag = 'input window, operand 2, single buffered']
    #allocation8 [shape = 'u8[32768]{0}', space=vmem, size = 0x8000, scoped, tag = 'output window, operand 0']
    #allocation9 [shape = 'u8[8192]{0}', space=vmem, size = 0x2000, scoped, tag = 'output window, operand 1']
    #allocation10 [shape = 's32[2]{0}', space=sflag, size = 0x8, scoped, tag = 'scoped memory for tpu_custom_call.1']
    %10 = vsyncpa [#allocation3], 0
    %s11 = scalar_lea.sflag [#allocation3], 1
    %12 = vsyncpa %s11, 0
    %13 = vsyncpa [#allocation6], 0
    %14 = vsyncpa [#allocation4], 0
    %s15 = scalar_lea.sflag [#allocation4], 1
    %16 = vsyncpa %s15, 0
    %17 = vsyncpa [#allocation10], 0
    %s18 = scalar_lea.sflag [#allocation10], 1
    %19 = vsyncpa %s18, 0
    loop: start=0, step=1, limit=4
    $region2: #{tpu_custom_call.1} parent=1 // loop_pre_header
      _
    $region3: #{tpu_custom_call.1} parent=1 // loop_header
      %s21 = sphi 0, %s25
      %p22 = scmp.ge.s32.totalorder %s21, 4
      %s28 = sphi 0, %s40
      %s29 = sphi 0, %s36
      %s30 = sphi 0, %s28
      %s31 = sphi 0, %s29
      %s32 = sphi 0, %s30
      %s33 = sphi 0, %s31
      %s45 = sphi 0, %s47
      %s48 = sphi 0, %s45
      %s49 = sphi 0, %s48
      %s65 = sphi 0, %s49
      %s69 = sphi 0, %s69
      %s71 = sphi 0, %s69
      %s72 = sphi 0, %s71
      %s86 = sphi 0, %s72
      %s90 = sphi 0, %s90
      %s92 = sphi 0, %s90
      %s93 = sphi 0, %s92
      %s107 = sphi 0, %s93
      %s115 = sphi 0, %s117
      %s118 = sphi 0, %s115
      %s119 = sphi 0, %s118
      %s135 = sphi 0, %s119
      %s143 = sphi 0, %s145
      %s146 = sphi 0, %s143
      %s147 = sphi 0, %s146
      %s163 = sphi 0, %s147
    $region4: #{tpu_custom_call.1} parent=1 // loop_header_branch
      %24 = sbr.rel (%p22) target = $region8
    $region5: #{tpu_custom_call.1} parent=1 // loop_body
      %s26 = ssub.s32 %s21, 1
      %s27 = ssub.s32 %s21, 2
      %s34 = sadd.s32 1, %s29
      %p35 = scmp.ge.s32.totalorder %s34, 1
      %s36 = scalar_select %p35, 0, %s34
      %s37 = sadd.s32 1, %s28
      %s38 = scalar_select %p35, %s37, %s28
      %p39 = scmp.ge.s32.totalorder %s38, 2
      %s40 = scalar_select %p39, 0, %s38
      %s41 = ssub.s32 %s28, %s40
      %s42 = ssub.s32 %s29, %s36
      %s43 = sor.u32 %s41, %s42
      %p44 = scmp.eq.s32.totalorder %s43, 0
      %s46 = sadd.s32 %s45, 1
      %s47 = scalar_select %p44, %s45, %s46
      %p50 = pneg %p44
      %p51 = scmp.eq.s32.totalorder %s21, 1
      %p52 = por %p50, %p51
      %p53 = scmp.ne.s32.totalorder %s45, %s48
      %p54 = scmp.eq.s32.totalorder %s21, 0
      %p55 = por %p53, %p54
      %p56 = scmp.ne.s32.totalorder %s45, %s48
      %p57 = scmp.eq.s32.totalorder %s26, 1
      %p58 = por %p56, %p57
      %p59 = scmp.ne.s32.totalorder %s48, %s49
      %p60 = scmp.eq.s32.totalorder %s26, 0
      %p61 = por %p59, %p60
      %p62 = scmp.ne.s32.totalorder %s48, %s49
      %p63 = scmp.eq.s32.totalorder %s27, 1
      %p64 = por %p62, %p63
      %p66 = scmp.ne.s32.totalorder %s49, %s65
      %p67 = scmp.eq.s32.totalorder %s27, 0
      %p68 = por %p66, %p67
      %s70 = sadd.s32 %s69, 1
      %p73 = scmp.eq.s32.totalorder %s21, 1
      %p74 = scmp.ne.s32.totalorder %s69, %s71
      %p75 = scmp.eq.s32.totalorder %s21, 0
      %p76 = por %p74, %p75
      %p77 = scmp.ne.s32.totalorder %s69, %s71
      %p78 = scmp.eq.s32.totalorder %s26, 1
      %p79 = por %p77, %p78
      %p80 = scmp.ne.s32.totalorder %s71, %s72
      %p81 = scmp.eq.s32.totalorder %s26, 0
      %p82 = por %p80, %p81
      %p83 = scmp.ne.s32.totalorder %s71, %s72
      %p84 = scmp.eq.s32.totalorder %s27, 1
      %p85 = por %p83, %p84
      %p87 = scmp.ne.s32.totalorder %s72, %s86
      %p88 = scmp.eq.s32.totalorder %s27, 0
      %p89 = por %p87, %p88
      %s91 = sadd.s32 %s90, 1
      %p94 = scmp.eq.s32.totalorder %s21, 1
      %p95 = scmp.ne.s32.totalorder %s90, %s92
      %p96 = scmp.eq.s32.totalorder %s21, 0
      %p97 = por %p95, %p96
      %p98 = scmp.ne.s32.totalorder %s90, %s92
      %p99 = scmp.eq.s32.totalorder %s26, 1
      %p100 = por %p98, %p99
      %p101 = scmp.ne.s32.totalorder %s92, %s93
      %p102 = scmp.eq.s32.totalorder %s26, 0
      %p103 = por %p101, %p102
      %p104 = scmp.ne.s32.totalorder %s92, %s93
      %p105 = scmp.eq.s32.totalorder %s27, 1
      %p106 = por %p104, %p105
      %p108 = scmp.ne.s32.totalorder %s93, %s107
      %p109 = scmp.eq.s32.totalorder %s27, 0
      %p110 = por %p108, %p109
      %s111 = ssub.s32 %s28, %s40
      %s112 = ssub.s32 %s29, %s36
      %s113 = sor.u32 %s111, %s112
      %p114 = scmp.eq.s32.totalorder %s113, 0
      %s116 = sadd.s32 %s115, 1
      %s117 = scalar_select %p114, %s115, %s116
      %p120 = pneg %p114
      %p121 = scmp.eq.s32.totalorder %s21, 1
      %p122 = por %p120, %p121
      %p123 = scmp.ne.s32.totalorder %s115, %s118
      %p124 = scmp.eq.s32.totalorder %s21, 0
      %p125 = por %p123, %p124
      %p126 = scmp.ne.s32.totalorder %s115, %s118
      %p127 = scmp.eq.s32.totalorder %s26, 1
      %p128 = por %p126, %p127
      %p129 = scmp.ne.s32.totalorder %s118, %s119
      %p130 = scmp.eq.s32.totalorder %s26, 0
      %p131 = por %p129, %p130
      %p132 = scmp.ne.s32.totalorder %s118, %s119
      %p133 = scmp.eq.s32.totalorder %s27, 1
      %p134 = por %p132, %p133
      %p136 = scmp.ne.s32.totalorder %s119, %s135
      %p137 = scmp.eq.s32.totalorder %s27, 0
      %p138 = por %p136, %p137
      %s139 = ssub.s32 %s28, %s40
      %s140 = ssub.s32 %s29, %s36
      %s141 = sor.u32 %s139, %s140
      %p142 = scmp.eq.s32.totalorder %s141, 0
      %s144 = sadd.s32 %s143, 1
      %s145 = scalar_select %p142, %s143, %s144
      %p148 = pneg %p142
      %p149 = scmp.eq.s32.totalorder %s21, 1
      %p150 = por %p148, %p149
      %p151 = scmp.ne.s32.totalorder %s143, %s146
      %p152 = scmp.eq.s32.totalorder %s21, 0
      %p153 = por %p151, %p152
      %p154 = scmp.ne.s32.totalorder %s143, %s146
      %p155 = scmp.eq.s32.totalorder %s26, 1
      %p156 = por %p154, %p155
      %p157 = scmp.ne.s32.totalorder %s146, %s147
      %p158 = scmp.eq.s32.totalorder %s26, 0
      %p159 = por %p157, %p158
      %p160 = scmp.ne.s32.totalorder %s146, %s147
      %p161 = scmp.eq.s32.totalorder %s27, 1
      %p162 = por %p160, %p161
      %p164 = scmp.ne.s32.totalorder %s147, %s163
      %p165 = scmp.eq.s32.totalorder %s27, 0
      %p166 = por %p164, %p165
      %p167 = scmp.le.s32.totalorder 1, %s21
      %p168 = scmp.lt.s32.totalorder %s21, 3
      %p169 = pnand %p167, %p168
      %p170 = pneg %p169
      // Predicated region
      $region9: #{tpu_custom_call.1} parent=5 // pred_check
        _
      $region10: #{tpu_custom_call.1} parent=5 // pred_check_branch
        %172 = sbr.rel (%p169) target = $region12
      $region11: #{tpu_custom_call.1} parent=5 // pred_region
        %s173 = ssub.s32 %s21, 1
        // Predicated region
        $region13: #{tpu_custom_call.1} parent=11 // pred_check
          %p174 = pneg %p82
        $region14: #{tpu_custom_call.1} parent=11 // pred_check_branch
          %176 = sbr.rel (%p174) target = $region16
        $region15: #{tpu_custom_call.1} parent=11 // pred_region
          %s178 = ssub.s32 512, 512
          %179 = vsyncadd [#allocation6], %s178
          %s180 = sshll.u32 [#allocation5], 4
          %s181 = int_to_ptr.vmem [resolvable:$true] %s180
          %186 = dma.hbm_to_vmem [thread:$0]  %s1, 512, %s181, [#allocation6], 128, 128, 8
        $region16: #{tpu_custom_call.1} parent=11 // pred_fallthru
          _
        // Predicated region
        $region17: #{tpu_custom_call.1} parent=11 // pred_check
          %p187 = pneg %p103
        $region18: #{tpu_custom_call.1} parent=11 // pred_check_branch
          %189 = sbr.rel (%p187) target = $region20
        $region19: #{tpu_custom_call.1} parent=11 // pred_region
          %s191 = ssub.s32 16, 16
          %192 = vsyncadd [#allocation6], %s191
          %s194 = sshll.u32 [#allocation7], 4
          %s195 = int_to_ptr.vmem [resolvable:$true] %s194
          %197 = dma.hbm_to_vmem [thread:$0]  %s2, 16, %s195, [#allocation6]
        $region20: #{tpu_custom_call.1} parent=11 // pred_fallthru
          _
      $region12: #{tpu_custom_call.1} parent=5 // pred_fallthru
        _
      %p198 = scmp.lt.s32.totalorder %s21, 2
      // Predicated region
      $region21: #{tpu_custom_call.1} parent=5 // pred_check
        %p199 = pneg %p198
      $region22: #{tpu_custom_call.1} parent=5 // pred_check_branch
        %201 = sbr.rel (%p199) target = $region24
      $region23: #{tpu_custom_call.1} parent=5 // pred_region
        // Predicated region
        $region25: #{tpu_custom_call.1} parent=23 // pred_check
          %p202 = pneg %p55
        $region26: #{tpu_custom_call.1} parent=23 // pred_check_branch
          %204 = sbr.rel (%p202) target = $region28
        $region27: #{tpu_custom_call.1} parent=23 // pred_region
          %s205 = sand.u32 %s45, 1
          %s206 = scalar_lea.sflag [#allocation3], %s205
          %s207 = sand.u32 %s45, 1
          %s208 = smul.addr %s207, 8
          %s209 = scalar_lea.vmem [#allocation2], %s208
          %s211 = ssub.s32 128, 128
          %212 = vsyncadd %s206, %s211
          %s213 = sadd.s32 %s29, %s28
          %s214 = smul.addr %s213, 128
          %s215 = scalar_lea.hbm %s0, %s214
          %s217 = sshll.u32 %s209, 4
          %s218 = int_to_ptr.vmem [resolvable:$true] %s217
          %220 = dma.hbm_to_vmem [thread:$0]  %s215, 128, %s218, %s206
        $region28: #{tpu_custom_call.1} parent=23 // pred_fallthru
          _
      $region24: #{tpu_custom_call.1} parent=5 // pred_fallthru
        _
      %p221 = scmp.le.s32.totalorder 1, %s21
      %p222 = scmp.lt.s32.totalorder %s21, 3
      %p223 = pnand %p221, %p222
      %p224 = pneg %p223
      // Predicated region
      $region29: #{tpu_custom_call.1} parent=5 // pred_check
        _
      $region30: #{tpu_custom_call.1} parent=5 // pred_check_branch
        %226 = sbr.rel (%p223) target = $region32
      $region31: #{tpu_custom_call.1} parent=5 // pred_region
        %s227 = ssub.s32 %s21, 1
        %s228 = sand.u32 %s48, 1
        %s229 = scalar_lea.sflag [#allocation3], %s228
        %s230 = sand.u32 %s48, 1
        %s231 = smul.addr %s230, 8
        %s232 = scalar_lea.vmem [#allocation2], %s231
        // Predicated region
        $region33: #{tpu_custom_call.1} parent=31 // pred_check
          %p233 = pneg %p61
        $region34: #{tpu_custom_call.1} parent=31 // pred_check_branch
          %235 = sbr.rel (%p233) target = $region36
        $region35: #{tpu_custom_call.1} parent=31 // pred_region
          %236 = dma.done %s229, 128
        $region36: #{tpu_custom_call.1} parent=31 // pred_fallthru
          _
        // Predicated region
        $region37: #{tpu_custom_call.1} parent=31 // pred_check
          %p237 = pneg %p82
        $region38: #{tpu_custom_call.1} parent=31 // pred_check_branch
          %239 = sbr.rel (%p237) target = $region40
        $region39: #{tpu_custom_call.1} parent=31 // pred_region
          %240 = dma.done [#allocation6], 512
        $region40: #{tpu_custom_call.1} parent=31 // pred_fallthru
          _
        // Predicated region
        $region41: #{tpu_custom_call.1} parent=31 // pred_check
          %p241 = pneg %p103
        $region42: #{tpu_custom_call.1} parent=31 // pred_check_branch
          %243 = sbr.rel (%p241) target = $region44
        $region43: #{tpu_custom_call.1} parent=31 // pred_region
          %244 = dma.done [#allocation6], 16
        $region44: #{tpu_custom_call.1} parent=31 // pred_fallthru
          _
        %s245 = sand.u32 %s48, 1
        %s246 = scalar_lea.sflag [#allocation3], %s245
        %s247 = sand.u32 %s48, 1
        %s248 = smul.addr %s247, 8
        %s249 = scalar_lea.vmem [#allocation2], %s248
        %p250 = pneg %p61
        %p251 = pneg %p58
        %p252 = pneg %p82
        %p253 = pneg %p79
        %p254 = pneg %p103
        %p255 = pneg %p100
        %p256 = pneg %p131
        %p257 = pneg %p128
        %s258 = sand.u32 %s118, 1
        %s259 = scalar_lea.sflag [#allocation4], %s258
        %s260 = sand.u32 %s118, 1
        %s261 = smul.addr %s260, 32
        %s262 = scalar_lea.vmem [#allocation8], %s261
        %p263 = pneg %p159
        %p264 = pneg %p156
        %s265 = sand.u32 %s146, 1
        %s266 = scalar_lea.sflag [#allocation10], %s265
        %s267 = sand.u32 %s146, 1
        %s268 = smul.addr %s267, 8
        %s269 = scalar_lea.vmem [#allocation9], %s268
        %v270 = vld [vmem:[%s232] sm:$0xff]
        %v271 = vld [vmem:[#allocation5] sm:$0xff]
        %v272 = vld [vmem:[#allocation5 + $0x8] sm:$0xff]
        %v273 = vld [vmem:[#allocation5 + $0x10] sm:$0xff]
        %v274 = vld [vmem:[#allocation5 + $0x18] sm:$0xff]
        %v275 = vld [vmem:[#allocation7] sm:$0x1]
        %v277 = vlaneseq
        %v278 = vshrl.u32 %v277, 7
        %v279 = vsub.s32 0, %v278
        %v280 = vrot.slane %v275, %v279
        %vm282 = vcmask 261120
        %v284 = vsel %vm282, %v270, 0
        %286 = vmatprep.subr.mxu0 0.0
        %287 = vmatpush1.msra.mxu0 %v271
        %288 = vmatprep.subr.mxu0 0.0
        %289 = vmatpush1.msra.mxu0 %v272
        %290 = vmatprep.subr.mxu0 0.0
        %291 = vmatpush1.msra.mxu0 %v273
        %292 = vmatprep.subr.mxu0 0.0
        %293 = vmatpush1.msra.mxu0 %v274
        %294 = vmatprep.subr.mxu0 0.0
        %295 = vmatpush1.msra.mxu0 0.0
        %296 = vmatprep.subr.mxu0 0.0
        %297 = vmatpush1.msra.mxu0 0.0
        %298 = vmatprep.subr.mxu0 0.0
        %299 = vmatpush1.msra.mxu0 0.0
        %300 = vmatprep.subr.mxu0 0.0
        %301 = vmatpush1.msra.mxu0 0.0
        %302 = vmatprep.subr.mxu0 0.0
        %303 = vmatpush1.msra.mxu0 0.0
        %304 = vmatprep.subr.mxu0 0.0
        %305 = vmatpush1.msra.mxu0 0.0
        %306 = vmatprep.subr.mxu0 0.0
        %307 = vmatpush1.msra.mxu0 0.0
        %308 = vmatprep.subr.mxu0 0.0
        %309 = vmatpush1.msra.mxu0 0.0
        %310 = vmatprep.subr.mxu0 0.0
        %311 = vmatpush1.msra.mxu0 0.0
        %312 = vmatprep.subr.mxu0 0.0
        %313 = vmatpush1.msra.mxu0 0.0
        %314 = vmatprep.subr.mxu0 0.0
        %315 = vmatpush1.msra.mxu0 0.0
        %316 = vmatprep.subr.mxu0 0.0
        %317 = vmatpush1.msra.mxu0 0.0
        %318 = vmatprep.subr.mxu0 0.0
        %319 = vmatpush1.msra.mxu0 0.0
        %320 = vmatprep.subr.mxu0 0.0
        %321 = vmatpush1.msra.mxu0 0.0
        %322 = vmatprep.subr.mxu0 0.0
        %323 = vmatpush1.msra.mxu0 0.0
        %324 = vmatprep.subr.mxu0 0.0
        %325 = vmatpush1.msra.mxu0 0.0
        %326 = vmatprep.subr.mxu0 0.0
        %327 = vmatpush1.msra.mxu0 0.0
        %328 = vmatprep.subr.mxu0 0.0
        %329 = vmatpush1.msra.mxu0 0.0
        %330 = vmatprep.subr.mxu0 0.0
        %331 = vmatpush1.msra.mxu0 0.0
        %332 = vmatprep.subr.mxu0 0.0
        %333 = vmatpush1.msra.mxu0 0.0
        %334 = vmatprep.subr.mxu0 0.0
        %335 = vmatpush1.msra.mxu0 0.0
        %336 = vmatprep.subr.mxu0 0.0
        %337 = vmatpush1.msra.mxu0 0.0
        %338 = vmatprep.subr.mxu0 0.0
        %339 = vmatpush1.msra.mxu0 0.0
        %340 = vmatprep.subr.mxu0 0.0
        %341 = vmatpush1.msra.mxu0 0.0
        %342 = vmatprep.subr.mxu0 0.0
        %343 = vmatpush1.msra.mxu0 0.0
        %344 = vmatprep.subr.mxu0 0.0
        %345 = vmatpush1.msra.mxu0 0.0
        %346 = vmatprep.subr.mxu0 0.0
        %347 = vmatpush1.msra.mxu0 0.0
        %348 = vmatprep.subr.mxu0 0.0
        %349 = vmatpush1.msra.mxu0 0.0
        %350 = vmatprep.mubr.f32.mxu0 0.0
        %351 = vmatmul.mubr.f32.gmra.mrb[0].mxu0 %v284
        %v352 = vpop.f32.mrb[0].mxu0
        %v353 = vadd.f32 %v280, %v352
        %v354 = vpop.f32.mrb[0].mxu0
        %355 = vdwg.mxu0
        %356 = vxpose.xlu0.b32.start [1/16] %v353, 128
        %357 = vxpose.xlu0.b32.cont [2/16] 0.0, 128
        %358 = vxpose.xlu0.b32.cont [3/16] 0.0, 128
        %359 = vxpose.xlu0.b32.cont [4/16] 0.0, 128
        %360 = vxpose.xlu0.b32.cont [5/16] 0.0, 128
        %361 = vxpose.xlu0.b32.cont [6/16] 0.0, 128
        %362 = vxpose.xlu0.b32.cont [7/16] 0.0, 128
        %363 = vxpose.xlu0.b32.cont [8/16] 0.0, 128
        %364 = vxpose.xlu0.b32.cont [9/16] 0.0, 128
        %365 = vxpose.xlu0.b32.cont [10/16] 0.0, 128
        %366 = vxpose.xlu0.b32.cont [11/16] 0.0, 128
        %367 = vxpose.xlu0.b32.cont [12/16] 0.0, 128
        %368 = vxpose.xlu0.b32.cont [13/16] 0.0, 128
        %369 = vxpose.xlu0.b32.cont [14/16] 0.0, 128
        %370 = vxpose.xlu0.b32.cont [15/16] 0.0, 128
        %371 = vxpose.xlu0.b32.end [16/16] 0.0, 128
        %v372 = vpop.trf.xlu0
        %v373 = vpop.trf.xlu0
        %v374 = vpop.trf.xlu0
        %v375 = vpop.trf.xlu0
        %v376 = vpop.trf.xlu0
        %v377 = vpop.trf.xlu0
        %v378 = vpop.trf.xlu0
        %v379 = vpop.trf.xlu0
        %v380 = vpop.trf.xlu0
        %v381 = vpop.trf.xlu0
        %v382 = vpop.trf.xlu0
        %v383 = vpop.trf.xlu0
        %v384 = vpop.trf.xlu0
        %v385 = vpop.trf.xlu0
        %v386 = vpop.trf.xlu0
        %v387 = vpop.trf.xlu0
        %vm388 = vcmask 64512
        %389 = vst.msk [vmem:[%s262] sm:$0xff] %vm388, %v372
        %390 = vst.msk [vmem:[%s262 + $0x8] sm:$0xff] %vm388, %v373
        %391 = vst.msk [vmem:[%s262 + $0x10] sm:$0xff] %vm388, %v374
        %392 = vst.msk [vmem:[%s262 + $0x18] sm:$0xff] %vm388, %v375
        %394 = vrot.lane.b32.xlu0 %v353, 96
        %v395 = vpop.permute.xlu0 %394
        %397 = vst.msk [vmem:[%s269] sm:$0xff] %vm282, %v395
        %s398 = sand.u32 %s118, 1
        %s399 = scalar_lea.sflag [#allocation4], %s398
        %s400 = sand.u32 %s118, 1
        %s401 = smul.addr %s400, 32
        %s402 = scalar_lea.vmem [#allocation8], %s401
        %s403 = sand.u32 %s146, 1
        %s404 = scalar_lea.sflag [#allocation10], %s403
        %s405 = sand.u32 %s146, 1
        %s406 = smul.addr %s405, 8
        %s407 = scalar_lea.vmem [#allocation9], %s406
        // Predicated region
        $region45: #{tpu_custom_call.1} parent=31 // pred_check
          %p408 = pneg %p128
        $region46: #{tpu_custom_call.1} parent=31 // pred_check_branch
          %410 = sbr.rel (%p408) target = $region48
        $region47: #{tpu_custom_call.1} parent=31 // pred_region
          %s412 = ssub.s32 512, 512
          %413 = vsyncadd %s399, %s412
          %s414 = smul.addr %s30, 4
          %s415 = sadd.s32 %s31, %s414
          %s416 = smul.addr %s415, 128
          %s417 = scalar_lea.hbm %s3, %s416
          %s418 = sshll.u32 %s402, 4
          %s419 = int_to_ptr.vmem [resolvable:$true] %s418
          %424 = dma.vmem_to_hbm [thread:$0]  %s419, 512, %s417, %s399, 128, 128, 8
        $region48: #{tpu_custom_call.1} parent=31 // pred_fallthru
          _
        // Predicated region
        $region49: #{tpu_custom_call.1} parent=31 // pred_check
          %p425 = pneg %p156
        $region50: #{tpu_custom_call.1} parent=31 // pred_check_branch
          %427 = sbr.rel (%p425) target = $region52
        $region51: #{tpu_custom_call.1} parent=31 // pred_region
          %s429 = ssub.s32 128, 128
          %430 = vsyncadd %s404, %s429
          %s431 = sadd.s32 %s31, %s30
          %s432 = smul.addr %s431, 128
          %s433 = scalar_lea.hbm %s4, %s432
          %s435 = sshll.u32 %s407, 4
          %s436 = int_to_ptr.vmem [resolvable:$true] %s435
          %438 = dma.vmem_to_hbm [thread:$0]  %s436, 128, %s433, %s404
        $region52: #{tpu_custom_call.1} parent=31 // pred_fallthru
          _
      $region32: #{tpu_custom_call.1} parent=5 // pred_fallthru
        _
      %p439 = scmp.le.s32.totalorder 2, %s21
      // Predicated region
      $region53: #{tpu_custom_call.1} parent=5 // pred_check
        %p440 = pneg %p439
      $region54: #{tpu_custom_call.1} parent=5 // pred_check_branch
        %442 = sbr.rel (%p440) target = $region56
      $region55: #{tpu_custom_call.1} parent=5 // pred_region
        %s443 = ssub.s32 %s21, 2
        // Predicated region
        $region57: #{tpu_custom_call.1} parent=55 // pred_check
          %p444 = pneg %p134
        $region58: #{tpu_custom_call.1} parent=55 // pred_check_branch
          %446 = sbr.rel (%p444) target = $region60
        $region59: #{tpu_custom_call.1} parent=55 // pred_region
          %s447 = sand.u32 %s119, 1
          %s448 = scalar_lea.sflag [#allocation4], %s447
          %s449 = sand.u32 %s119, 1
          %s450 = smul.addr %s449, 32
          %s451 = scalar_lea.vmem [#allocation8], %s450
          %452 = dma.done %s448, 512
        $region60: #{tpu_custom_call.1} parent=55 // pred_fallthru
          _
        // Predicated region
        $region61: #{tpu_custom_call.1} parent=55 // pred_check
          %p453 = pneg %p162
        $region62: #{tpu_custom_call.1} parent=55 // pred_check_branch
          %455 = sbr.rel (%p453) target = $region64
        $region63: #{tpu_custom_call.1} parent=55 // pred_region
          %s456 = sand.u32 %s147, 1
          %s457 = scalar_lea.sflag [#allocation10], %s456
          %s458 = sand.u32 %s147, 1
          %s459 = smul.addr %s458, 8
          %s460 = scalar_lea.vmem [#allocation9], %s459
          %461 = dma.done %s457, 128
        $region64: #{tpu_custom_call.1} parent=55 // pred_fallthru
          _
      $region56: #{tpu_custom_call.1} parent=5 // pred_fallthru
        _
    $region6: #{tpu_custom_call.1} parent=1 // loop_footer
      %s25 = sadd.s32 1, %s21
    $region7: #{tpu_custom_call.1} parent=1 // loop_footer_branch
      %20 = sbr.rel target = $region3
    $region8: #{tpu_custom_call.1} parent=1 // loop_exit
      _
    %462 = vsyncpa [#allocation3], 1
    %s463 = scalar_lea.sflag [#allocation3], 1
    %464 = vsyncpa %s463, 1
    %465 = vsyncpa [#allocation6], 1
    %466 = vsyncpa [#allocation4], 1
    %s467 = scalar_lea.sflag [#allocation4], 1
    %468 = vsyncpa %s467, 1
    %469 = vsyncpa [#allocation10], 1
    %s470 = scalar_lea.sflag [#allocation10], 1
    %471 = vsyncpa %s470, 1

</llo_original>
